<compile_context>
chip_gen: v7x
topology: tpu7x:2x2x1
jax: 0.10.0
libtpu: 0.0.40
codegen_flags: <defaults>
</compile_context>

<pallas_src>
import math

import jax
import jax.numpy as jnp
from jax.experimental import pallas as pl
from jax.experimental.pallas import tpu as pltpu


def _scale_kernel(scale_ref, x_ref, o_ref):
    # scale_ref: (1,) f32 in SMEM; x_ref / o_ref: (tile_rows, tile_lane) VMEM tiles.
    s = scale_ref[0].astype(x_ref.dtype)
    o_ref[...] = (x_ref[...] * s).astype(o_ref.dtype)


# ~4 MiB per block: in + out, each double-buffered -> ~16 MiB VMEM.
_TARGET_BLOCK_BYTES = 4 * 1024 * 1024
# Give up on the kernel path (fall back to plain XLA) if even the minimal
# legal block would exceed this (pathological unaligned huge-lane shapes).
_MAX_SINGLE_BLOCK_BYTES = 6 * 1024 * 1024


def _round_up(n: int, m: int) -> int:
    return (n + m - 1) // m * m


def _round_down(n: int, m: int) -> int:
    return (n // m) * m


def _plan(shape, itemsize):
    """Layout-preserving 2-D collapse plan.

    Returns (rows, lane, tile_rows, tile_lane) or None if no reasonable tiling
    exists (caller falls back to plain XLA).
    """
    total = math.prod(shape)

    # Merge the smallest number of trailing dims whose product is a multiple of
    # 128 (lane-aligned -> unmasked full-width vector stores).  Merging whole
    # trailing dims keeps element order, so the reshape is cheap; otherwise
    # keep the natural last dim and let Pallas mask the lane tail.
    lane = shape[-1]
    t = 1
    for d in reversed(shape):
        t *= d
        if t % 128 == 0:
            lane = t
            break
    rows = total // lane

    # dtype-aware sublane multiple: f32 -> 8, bf16/f16 -> 16, fp8 -> 32.
    sub = max(8, 32 // max(itemsize, 1))
    padded_lane_bytes = _round_up(lane, 128) * itemsize  # VMEM tiles pad lanes to 128

    if padded_lane_bytes * sub <= _TARGET_BLOCK_BYTES:
        # Common case: full-extent lane axis, block along rows only.
        tile_lane = lane
        tile_rows = _round_down(_TARGET_BLOCK_BYTES // padded_lane_bytes, sub)
        tile_rows = min(rows, max(sub, tile_rows))
    elif lane % 128 == 0:
        # Huge aligned lane axis: block it at a multiple of 128.
        tile_rows = min(rows, sub)
        tile_lane = _round_down(_TARGET_BLOCK_BYTES // (itemsize * max(tile_rows, 1)), 128)
        tile_lane = max(128, min(lane, tile_lane))
    else:
        # Huge unaligned lane axis: can't legally block the lane dim.
        tile_rows = min(rows, sub)
        tile_lane = lane
        if padded_lane_bytes * tile_rows > _MAX_SINGLE_BLOCK_BYTES:
            return None
    return rows, lane, tile_rows, tile_lane


def scale_forward(x: jax.Array, scale: jax.Array, *, in_place: bool = False) -> jax.Array:
    """Equivalent of Scale.forward: y = x * scale (scale is a learnable scalar)."""
    dtype = x.dtype
    scale_f32 = jnp.asarray(scale, dtype=jnp.float32).reshape(1)

    if not jnp.issubdtype(dtype, jnp.floating):
        # TODO(synk): integer inputs promote to float (like torch int * float
        # 0-dim tensor); no Pallas kernel for this rare case.
        return x * scale_f32[0]

    if x.ndim == 0 or x.size == 0:
        # Scalar / zero-sized inputs: not worth (or not legal for) a kernel.
        return (x * scale_f32[0].astype(dtype)).astype(dtype)

    itemsize = jnp.dtype(dtype).itemsize
    plan = _plan(x.shape, itemsize)
    if plan is None:
        # TODO(synk): pathological unaligned huge-lane shape; plain XLA multiply.
        return (x * scale_f32[0].astype(dtype)).astype(dtype)

    rows, lane, tile_rows, tile_lane = plan

    # Collapses leading dims / merges whole trailing dims only -> no pad, no slice.
    x2d = x.reshape(rows, lane)
    grid = (pl.cdiv(rows, tile_rows), pl.cdiv(lane, tile_lane))

    extra_kwargs = {}
    if in_place:
        # In-place scale: only beneficial when x is donated at the jit boundary.
        extra_kwargs["input_output_aliases"] = {1: 0}

    out2d = pl.pallas_call(
        _scale_kernel,
        out_shape=jax.ShapeDtypeStruct((rows, lane), dtype),
        grid_spec=pltpu.PrefetchScalarGridSpec(
            num_scalar_prefetch=0,
            grid=grid,
            in_specs=[
                pl.BlockSpec(memory_space=pltpu.SMEM),                 # scale scalar
                pl.BlockSpec((tile_rows, tile_lane), lambda i, j: (i, j)),
            ],
            out_specs=pl.BlockSpec((tile_rows, tile_lane), lambda i, j: (i, j)),
        ),
        compiler_params=pltpu.CompilerParams(
            dimension_semantics=("parallel", "parallel"),  # shard blocks across TCs
            vmem_limit_bytes=32 * 1024 * 1024,
        ),
        **extra_kwargs,
    )(scale_f32, x2d)

    return out2d.reshape(x.shape)


class ScalePallas:
    """Mirror of the PyTorch Scale module with a deterministic parameter."""

    def __init__(self, scale: float = 1.0, in_place: bool = False):
        # nn.Parameter(torch.tensor(scale)) -> scalar f32 parameter, shape ()
        self.scale = jnp.asarray(scale, dtype=jnp.float32)
        self.in_place = in_place

    def __call__(self, x: jax.Array) -> jax.Array:
        return scale_forward(x, self.scale, in_place=self.in_place)


if __name__ == "__main__":
    module = ScalePallas(scale=1.5)

    # NCHW input consistent with typical use of Scale inside detection heads.
    # Trailing product 16*16 = 256 is 128-aligned -> full-width store path.
    x = jax.random.normal(jax.random.PRNGKey(0), (2, 4, 16, 16), dtype=jnp.float32)
    ref = x * jnp.float32(1.5)
    y = jax.block_until_ready(module(x))
    assert y.shape == x.shape and y.dtype == x.dtype
    assert jnp.allclose(y, ref, atol=1e-6, rtol=1e-6)

    # Awkward (non-128-divisible) shape: natural collapse, masked lane stores,
    # no pad/slice round trips.
    x2 = jax.random.normal(jax.random.PRNGKey(1), (3, 5, 7), dtype=jnp.float32)
    y2 = jax.block_until_ready(module(x2))
    assert y2.shape == x2.shape and y2.dtype == x2.dtype
    assert jnp.allclose(y2, x2 * jnp.float32(1.5), atol=1e-6, rtol=1e-6)

    # bf16 NCHW with W=20 (typical detection-head stride): trailing product
    # 8*20*20 = 3200 is 128-aligned -> merged-lane path, bf16 compute.
    x3 = jax.random.normal(jax.random.PRNGKey(2), (2, 8, 20, 20), dtype=jnp.bfloat16)
    ref3 = x3 * jnp.asarray(1.5, dtype=jnp.bfloat16)
    y3 = jax.block_until_ready(module(x3))
    assert y3.shape == x3.shape and y3.dtype == x3.dtype
    assert jnp.allclose(y3.astype(jnp.float32), ref3.astype(jnp.float32), atol=1e-2, rtol=1e-2)

    # in_place / input_output_aliases path (reference computed first).
    x4 = jax.random.normal(jax.random.PRNGKey(3), (2, 4, 16, 16), dtype=jnp.float32)
    ref4 = x4 * jnp.float32(1.5)
    y4 = jax.block_until_ready(scale_forward(x4, module.scale, in_place=True))
    assert jnp.allclose(y4, ref4, atol=1e-6, rtol=1e-6)

    print("KERNEL_OK")
</pallas_src>

<mosaic_0001>
module attributes {stable_mosaic.version = 11 : i64} {
  func.func @_scale_kernel(%arg0: i32, %arg1: i32, %arg2: memref<1xf32, #tpu.memory_space<smem>>, %arg3: memref<8x256xf32, #tpu.memory_space<vmem>>, %arg4: memref<8x256xf32, #tpu.memory_space<vmem>>) attributes {dimension_semantics = [#tpu.dimension_semantics<parallel>, #tpu.dimension_semantics<parallel>], iteration_bounds = array<i64: 1, 1>, scalar_prefetch = 0 : i64, scratch_operands = 0 : i64, tpu.core_type = #tpu.core_type<tc>, window_params = [{transform_indices = @transform_0, window_bounds = array<i64: 1>}, {transform_indices = @transform_1, window_bounds = array<i64: 8, 256>}, {transform_indices = @transform_2, window_bounds = array<i64: 8, 256>}]} {
    %c0 = arith.constant 0 : index
    %0 = memref.load %arg2[%c0] : memref<1xf32, #tpu.memory_space<smem>>
    %c0_0 = arith.constant 0 : index
    %c0_1 = arith.constant 0 : index
    %1 = vector.load %arg3[%c0_0, %c0_1] : memref<8x256xf32, #tpu.memory_space<vmem>>, vector<8x256xf32>
    %2 = vector.broadcast %0 : f32 to vector<8x256xf32>
    %3 = arith.mulf %1, %2 : vector<8x256xf32>
    %c0_2 = arith.constant 0 : index
    %c0_3 = arith.constant 0 : index
    %4 = vector.load %arg4[%c0_2, %c0_3] : memref<8x256xf32, #tpu.memory_space<vmem>>, vector<8x256xf32>
    tpu.vector_store %arg4[%c0_2, %c0_3], %3 {strides = array<i32>} : memref<8x256xf32, #tpu.memory_space<vmem>>, vector<8x256xf32>,
    return
  }
  func.func @transform_0(%arg0: i32, %arg1: i32) -> i32 {
    %c0_i32 = arith.constant 0 : i32
    %c0_i32_0 = arith.constant 0 : i32
    return %c0_i32 : i32
  }
  func.func @transform_1(%arg0: i32, %arg1: i32) -> (i32, i32) {
    %c0_i32 = arith.constant 0 : i32
    return %arg0, %arg1 : i32, i32
  }
  func.func @transform_2(%arg0: i32, %arg1: i32) -> (i32, i32) {
    %c0_i32 = arith.constant 0 : i32
    return %arg0, %arg1 : i32, i32
  }
}

</mosaic_0001>

<llo_original>
// kernel: tpu_custom_call.1
$region0: #{tpu_custom_call.1}
  #allocation0 [shape = 'u32[]', space=smem, size = 0x4, offset = 0x4, fixed_abs, tag = 'smem constant byte address 0x4 - core index']
  #allocation1 [shape = 'u32[144,128]{1,0:T(1,128)}', space=vmem, size = 0x12000, scoped, tag = 'internal scratch']
  #allocation2 [shape = 'f32[1]{0:T(128)S(6)}', space=smem, size = 0x200, scoped, tag = 'scoped memory for tpu_custom_call.1']
  %s0 = inlined_call_operand.<no memory space> [shape: f32[1], index: 0, kind: input, shape index: {}]
  %s1 = inlined_call_operand.hbm [shape: f32[8,256], index: 1, kind: input, shape index: {}]
  %s2 = inlined_call_operand.hbm [shape: f32[8,256], index: 2, kind: output, shape index: {}]
  %s3 = sld [smem:[#allocation0]]
  $region22: #{tpu_custom_call.1} parent=0
    _
  %s5 = ssub.s32 1, %s3
  %s6 = scalar_select 0, %s5, %s3
  %7 = sst [smem:[#allocation2]] %s0
  $region1: #{tpu_custom_call.1} parent=0
    #allocation3 [shape = 'u8[8192]{0}', space=vmem, size = 0x2000, scoped, tag = 'input window, operand 1, single buffered']
    #allocation4 [shape = 's32[1]{0}', space=sflag, size = 0x4, scoped, tag = 'scoped memory for tpu_custom_call.1']
    #allocation5 [shape = 's32[1]{0}', space=sflag, size = 0x4, scoped, tag = 'scoped memory for tpu_custom_call.1']
    #allocation6 [shape = 'u8[8192]{0}', space=vmem, size = 0x2000, scoped, tag = 'output window, operand 0, single buffered']
    %8 = vsyncpa [#allocation4], 0
    %9 = vsyncpa [#allocation5], 0
    // Predicated region
    $region2: #{tpu_custom_call.1} parent=1 // pred_check
      _
    $region3: #{tpu_custom_call.1} parent=1 // pred_check_branch
      %11 = sbr.rel (0) target = $region5
    $region4: #{tpu_custom_call.1} parent=1 // pred_region
      _
    $region5: #{tpu_custom_call.1} parent=1 // pred_fallthru
      _
    // Predicated region
    $region6: #{tpu_custom_call.1} parent=1 // pred_check
      _
    $region7: #{tpu_custom_call.1} parent=1 // pred_check_branch
      %13 = sbr.rel (0) target = $region9
    $region8: #{tpu_custom_call.1} parent=1 // pred_region
      %s15 = ssub.s32 256, 256
      %16 = vsyncadd [#allocation4], %s15
      %s18 = sshll.u32 [#allocation3], 4
      %s19 = int_to_ptr.vmem [resolvable:$true] %s18
      %21 = dma.hbm_to_vmem [thread:$0]  %s1, 256, %s19, [#allocation4]
    $region9: #{tpu_custom_call.1} parent=1 // pred_fallthru
      _
    // Predicated region
    $region10: #{tpu_custom_call.1} parent=1 // pred_check
      _
    $region11: #{tpu_custom_call.1} parent=1 // pred_check_branch
      %23 = sbr.rel (0) target = $region13
    $region12: #{tpu_custom_call.1} parent=1 // pred_region
      %24 = dma.done [#allocation4], 256
    $region13: #{tpu_custom_call.1} parent=1 // pred_fallthru
      _
    %s25 = sld [smem:[#allocation2]]
    %v26 = vld [vmem:[#allocation3] sm:$0xff]
    %v27 = vld [vmem:[#allocation3 + $0x8] sm:$0xff]
    %v28 = vstv %s25
    %v29 = vmul.f32 %v26, %v28
    %v30 = vmul.f32 %v27, %v28
    %31 = vst [vmem:[#allocation6] sm:$0xff] %v29
    %32 = vst [vmem:[#allocation6 + $0x8] sm:$0xff] %v30
    // Predicated region
    $region14: #{tpu_custom_call.1} parent=1 // pred_check
      _
    $region15: #{tpu_custom_call.1} parent=1 // pred_check_branch
      %34 = sbr.rel (0) target = $region17
    $region16: #{tpu_custom_call.1} parent=1 // pred_region
      %s36 = ssub.s32 256, 256
      %37 = vsyncadd [#allocation5], %s36
      %s39 = sshll.u32 [#allocation6], 4
      %s40 = int_to_ptr.vmem [resolvable:$true] %s39
      %42 = dma.vmem_to_hbm [thread:$0]  %s40, 256, %s2, [#allocation5]
    $region17: #{tpu_custom_call.1} parent=1 // pred_fallthru
      _
    // Predicated region
    $region18: #{tpu_custom_call.1} parent=1 // pred_check
      _
    $region19: #{tpu_custom_call.1} parent=1 // pred_check_branch
      %44 = sbr.rel (0) target = $region21
    $region20: #{tpu_custom_call.1} parent=1 // pred_region
      %45 = dma.done [#allocation5], 256
    $region21: #{tpu_custom_call.1} parent=1 // pred_fallthru
      _
    %46 = vsyncpa [#allocation4], 1
    %47 = vsyncpa [#allocation5], 1

</llo_original>
